<compile_context>
chip_gen: v7x
topology: tpu7x:2x2x1
jax: 0.10.0
libtpu: 0.0.40
codegen_flags: <defaults>
</compile_context>

<pallas_src>
import functools
import math

import jax
import jax.numpy as jnp
from jax.experimental import pallas as pl
from jax.experimental.pallas import tpu as pltpu

_LANES = 128
_SUBLANES = 8
_TILE = _SUBLANES * _LANES          # 1024 elements: minimum alignment unit
_BLOCK_ROWS = 2048                  # 2048 x 128 x 4B = 1 MiB per f32 block


# ---------------------------------------------------------------------------
# Kernels
# ---------------------------------------------------------------------------
def _abs_err_kernel(p_ref, y_ref, o_ref):
    # sqrt((p - y)^2) == |p - y|
    o_ref[...] = jnp.abs(p_ref[...] - y_ref[...])


def _abs_err_sum_kernel(p_ref, y_ref, o_ref, acc_ref):
    # Accumulate sum(|p - y|) into an (8, 128) f32 VMEM accumulator.  The
    # (block_rows, 128) -> (block_rows//8, 8, 128) reshape is layout-preserving
    # (each slice is exactly one (8,128) vreg tile), so the axis-0 sum is a
    # chain of VPU adds; the final scalar collapse happens outside the kernel.
    @pl.when(pl.program_id(1) == 0)
    def _():
        acc_ref[...] = jnp.zeros_like(acc_ref)

    d = p_ref[...].astype(jnp.float32) - y_ref[...].astype(jnp.float32)
    acc_ref[...] += jnp.abs(d).reshape(-1, _SUBLANES, _LANES).sum(axis=0)

    @pl.when(pl.program_id(1) == pl.num_programs(1) - 1)
    def _():
        o_ref[...] = acc_ref[...]


def _masked_channel_mean_kernel(p_ref, y_ref, o_ref):
    # Fused |p - y|.mean over the channel axis (dim=1); avoids materializing
    # the full (B, C, S) error tensor on the masked path.
    p = p_ref[...].astype(jnp.float32)                      # (1, C, s_block)
    q = y_ref[...].astype(jnp.float32)
    m = jnp.abs(p - q).mean(axis=1, keepdims=True)          # (1, 1, s_block)
    o_ref[...] = m.astype(o_ref.dtype)


# ---------------------------------------------------------------------------
# Wrappers
# ---------------------------------------------------------------------------
def _elementwise_error(pred, y):
    """|pred - y|: aligned prefix via the TPU kernel, <=1023-element tail in JAX."""
    orig_shape = pred.shape
    dtype = pred.dtype
    n = math.prod(orig_shape)
    p_flat = pred.reshape(-1)
    y_flat = y.reshape(-1)

    n_aligned = (n // _TILE) * _TILE
    if n_aligned == 0:
        return jnp.abs(pred - y)  # tiny input: no kernel needed

    rows = n_aligned // _LANES                      # multiple of 8
    block_rows = min(_BLOCK_ROWS, rows)
    grid = (pl.cdiv(rows, block_rows),)             # partial last block is OK
                                                    # (elementwise; OOB writes dropped)

    p2d = p_flat[:n_aligned].reshape(rows, _LANES)
    y2d = y_flat[:n_aligned].reshape(rows, _LANES)

    err2d = pl.pallas_call(
        _abs_err_kernel,
        out_shape=jax.ShapeDtypeStruct((rows, _LANES), dtype),
        grid_spec=pltpu.PrefetchScalarGridSpec(
            num_scalar_prefetch=0,
            grid=grid,
            in_specs=[
                pl.BlockSpec((block_rows, _LANES), lambda i: (i, 0)),
                pl.BlockSpec((block_rows, _LANES), lambda i: (i, 0)),
            ],
            out_specs=pl.BlockSpec((block_rows, _LANES), lambda i: (i, 0)),
        ),
        compiler_params=pltpu.CompilerParams(dimension_semantics=("parallel",)),
    )(p2d, y2d)

    err_flat = err2d.reshape(-1)
    if n_aligned < n:
        tail = jnp.abs(p_flat[n_aligned:] - y_flat[n_aligned:])
        err_flat = jnp.concatenate([err_flat, tail])
    return err_flat.reshape(orig_shape)


def _abs_err_total(pred, y):
    """sum(|pred - y|) as an f32 scalar (no intermediate error tensor)."""
    n = math.prod(pred.shape)
    p_flat = pred.reshape(-1)
    y_flat = y.reshape(-1)

    rows_total = (n // _TILE) * _SUBLANES           # rows of full (8,128) tiles
    block_rows = min(_BLOCK_ROWS, rows_total) if rows_total else 0
    n_blocks = rows_total // block_rows if block_rows else 0
    covered = n_blocks * block_rows * _LANES        # elements handled by the kernel

    total = jnp.float32(0.0)
    if n_blocks > 0:
        # Leading "parallel" axis so v7x's 2 TensorCores each stream half the
        # blocks; each core accumulates into its own (8,128) partial output.
        n_outer = 2 if (n_blocks % 2 == 0 and n_blocks >= 2) else 1
        n_inner = n_blocks // n_outer

        p2d = p_flat[:covered].reshape(n_blocks * block_rows, _LANES)
        y2d = y_flat[:covered].reshape(n_blocks * block_rows, _LANES)

        partials = pl.pallas_call(
            _abs_err_sum_kernel,
            out_shape=jax.ShapeDtypeStruct((n_outer * _SUBLANES, _LANES), jnp.float32),
            grid_spec=pltpu.PrefetchScalarGridSpec(
                num_scalar_prefetch=0,
                grid=(n_outer, n_inner),
                in_specs=[
                    pl.BlockSpec((block_rows, _LANES),
                                 lambda o, i: (o * n_inner + i, 0)),
                    pl.BlockSpec((block_rows, _LANES),
                                 lambda o, i: (o * n_inner + i, 0)),
                ],
                out_specs=pl.BlockSpec((_SUBLANES, _LANES), lambda o, i: (o, 0)),
                scratch_shapes=[pltpu.VMEM((_SUBLANES, _LANES), jnp.float32)],
            ),
            compiler_params=pltpu.CompilerParams(
                dimension_semantics=("parallel", "arbitrary")),
        )(p2d, y2d)
        total = partials.sum()

    if covered < n:
        # Small unaligned / remainder tail handled by plain XLA.
        tail = p_flat[covered:].astype(jnp.float32) - y_flat[covered:].astype(jnp.float32)
        total = total + jnp.abs(tail).sum()
    return total


def _masked_error(pred, y, mask):
    """(|pred - y|.mean(dim=1) * mask).sum() / mask.sum()"""
    shape = pred.shape
    dtype = pred.dtype
    if pred.ndim >= 3:
        B, C = shape[0], shape[1]
        S = math.prod(shape[2:])
        if S > 0 and S % _LANES == 0:
            p3 = pred.reshape(B, C, S)
            y3 = y.reshape(B, C, S)
            s_block = min(2048, S)
            per = pl.pallas_call(
                _masked_channel_mean_kernel,
                out_shape=jax.ShapeDtypeStruct((B, 1, S), dtype),
                grid_spec=pltpu.PrefetchScalarGridSpec(
                    num_scalar_prefetch=0,
                    grid=(B, pl.cdiv(S, s_block)),
                    in_specs=[
                        pl.BlockSpec((1, C, s_block), lambda b, s: (b, 0, s)),
                        pl.BlockSpec((1, C, s_block), lambda b, s: (b, 0, s)),
                    ],
                    out_specs=pl.BlockSpec((1, 1, s_block), lambda b, s: (b, 0, s)),
                ),
                compiler_params=pltpu.CompilerParams(
                    dimension_semantics=("parallel", "parallel")),
            )(p3, y3)
            per = per.reshape((B,) + shape[2:])
            return (per * mask).sum() / mask.sum()
    # TODO(synk): unfused fallback when the flattened spatial extent is not a
    # multiple of 128 (or ndim < 3); it materializes the full error tensor.
    err = _elementwise_error(pred, y)
    return (err.mean(axis=1) * mask).sum() / mask.sum()


@functools.partial(jax.jit, static_argnames=("reduction",))
def rmse_loss(pred, y, mask=None, reduction="none"):
    if pred.shape != y.shape:
        raise ValueError("pred and y must have the same shape")
    if reduction not in ("none", "mean", "sum"):
        raise NotImplementedError(f"Reduction type {reduction} not supported.")
    dtype = pred.dtype

    if mask is not None:
        # The masked path already yields a scalar; mean/sum of a scalar is itself.
        return _masked_error(pred, y, mask).astype(dtype)

    if reduction == "none":
        return _elementwise_error(pred, y)

    # 'mean' / 'sum' without mask: single fused streaming reduction pass.
    n = math.prod(pred.shape)
    total = _abs_err_total(pred, y)
    if reduction == "sum":
        return total.astype(dtype)
    return (total / jnp.float32(n)).astype(dtype)


if __name__ == "__main__":
    key = jax.random.PRNGKey(0)
    k1, k2, k3 = jax.random.split(key, 3)

    # NCHW-style shapes, consistent with typical emulator usage.
    pred = jax.random.normal(k1, (2, 4, 16, 16), dtype=jnp.float32)
    y = jax.random.normal(k2, (2, 4, 16, 16), dtype=jnp.float32)
    ref = jnp.abs(pred - y)  # == sqrt((pred - y) ** 2)

    # reduction='none', mask=None (module defaults)
    out = jax.block_until_ready(rmse_loss(pred, y, reduction="none"))
    assert out.shape == pred.shape
    assert jnp.allclose(out, ref, atol=1e-6, rtol=1e-6)

    # reduction='mean' and 'sum' (fused streaming reduction, no error tensor)
    out_mean = jax.block_until_ready(rmse_loss(pred, y, reduction="mean"))
    assert jnp.allclose(out_mean, ref.mean(), atol=1e-5, rtol=1e-5)
    out_sum = jax.block_until_ready(rmse_loss(pred, y, reduction="sum"))
    assert jnp.allclose(out_sum, ref.sum(), atol=1e-3, rtol=1e-5)

    # masked path (fused channel-mean kernel)
    mask = (jax.random.uniform(k3, (2, 16, 16)) > 0.5).astype(jnp.float32)
    out_masked = jax.block_until_ready(rmse_loss(pred, y, mask=mask, reduction="none"))
    ref_masked = (ref.mean(axis=1) * mask).sum() / mask.sum()
    assert jnp.allclose(out_masked, ref_masked, atol=1e-5, rtol=1e-5)

    # element count not a multiple of 8*128: exercises prefix-kernel + JAX tail
    p2 = jax.random.normal(k1, (3, 5, 11, 13), dtype=jnp.float32)
    y2 = jax.random.normal(k2, (3, 5, 11, 13), dtype=jnp.float32)
    out2 = jax.block_until_ready(rmse_loss(p2, y2, reduction="none"))
    assert jnp.allclose(out2, jnp.abs(p2 - y2), atol=1e-6, rtol=1e-6)

    print("KERNEL_OK")
</pallas_src>

<mosaic_0001>
module attributes {stable_mosaic.version = 11 : i64} {
  func.func @_abs_err_kernel(%arg0: i32, %arg1: memref<16x128xf32, #tpu.memory_space<vmem>>, %arg2: memref<16x128xf32, #tpu.memory_space<vmem>>, %arg3: memref<16x128xf32, #tpu.memory_space<vmem>>) attributes {dimension_semantics = [#tpu.dimension_semantics<parallel>], iteration_bounds = array<i64: 1>, scalar_prefetch = 0 : i64, scratch_operands = 0 : i64, tpu.core_type = #tpu.core_type<tc>, window_params = [{transform_indices = @transform_0, window_bounds = array<i64: 16, 128>}, {transform_indices = @transform_1, window_bounds = array<i64: 16, 128>}, {transform_indices = @transform_2, window_bounds = array<i64: 16, 128>}]} {
    %c0 = arith.constant 0 : index
    %c0_0 = arith.constant 0 : index
    %0 = vector.load %arg1[%c0, %c0_0] : memref<16x128xf32, #tpu.memory_space<vmem>>, vector<16x128xf32>
    %c0_1 = arith.constant 0 : index
    %c0_2 = arith.constant 0 : index
    %1 = vector.load %arg2[%c0_1, %c0_2] : memref<16x128xf32, #tpu.memory_space<vmem>>, vector<16x128xf32>
    %2 = arith.subf %0, %1 : vector<16x128xf32>
    %3 = math.absf %2 : vector<16x128xf32>
    %c0_3 = arith.constant 0 : index
    %c0_4 = arith.constant 0 : index
    %4 = vector.load %arg3[%c0_3, %c0_4] : memref<16x128xf32, #tpu.memory_space<vmem>>, vector<16x128xf32>
    tpu.vector_store %arg3[%c0_3, %c0_4], %3 {strides = array<i32>} : memref<16x128xf32, #tpu.memory_space<vmem>>, vector<16x128xf32>,
    return
  }
  func.func @transform_0(%arg0: i32) -> (i32, i32) {
    %c0_i32 = arith.constant 0 : i32
    %c0_i32_0 = arith.constant 0 : i32
    return %arg0, %c0_i32 : i32, i32
  }
  func.func @transform_1(%arg0: i32) -> (i32, i32) {
    %c0_i32 = arith.constant 0 : i32
    %c0_i32_0 = arith.constant 0 : i32
    return %arg0, %c0_i32 : i32, i32
  }
  func.func @transform_2(%arg0: i32) -> (i32, i32) {
    %c0_i32 = arith.constant 0 : i32
    %c0_i32_0 = arith.constant 0 : i32
    return %arg0, %c0_i32 : i32, i32
  }
}

</mosaic_0001>

<llo_original>
// kernel: rmse_loss.1
$region0: #{rmse_loss.1}
  #allocation0 [shape = 'u32[]', space=smem, size = 0x4, offset = 0x4, fixed_abs, tag = 'smem constant byte address 0x4 - core index']
  #allocation1 [shape = 'u32[144,128]{1,0:T(1,128)}', space=vmem, size = 0x12000, scoped, tag = 'internal scratch']
  %s0 = inlined_call_operand.vmem [shape: f32[16,128], index: 0, kind: input, shape index: {}]
  %s1 = inlined_call_operand.vmem [shape: f32[16,128], index: 1, kind: input, shape index: {}]
  %s2 = inlined_call_operand.vmem [shape: f32[16,128], index: 2, kind: output, shape index: {}]
  %s3 = sld [smem:[#allocation0]]
  $region18: #{rmse_loss.1} parent=0
    _
  %s5 = ssub.s32 1, %s3
  %s6 = scalar_select 0, %s5, %s3
  // Predicated region
  $region2: #{rmse_loss.1} parent=0 // pred_check
    _
  $region3: #{rmse_loss.1} parent=0 // pred_check_branch
    %8 = sbr.rel (0) target = $region5
  $region4: #{rmse_loss.1} parent=0 // pred_region
    _
  $region5: #{rmse_loss.1} parent=0 // pred_fallthru
    _
  // Predicated region
  $region6: #{rmse_loss.1} parent=0 // pred_check
    _
  $region7: #{rmse_loss.1} parent=0 // pred_check_branch
    %10 = sbr.rel (0) target = $region9
  $region8: #{rmse_loss.1} parent=0 // pred_region
    _
  $region9: #{rmse_loss.1} parent=0 // pred_fallthru
    _
  %v11 = vld [vmem:[%s0] sm:$0xff]
  %v12 = vld [vmem:[%s0 + $0x8] sm:$0xff]
  %v13 = vld [vmem:[%s1] sm:$0xff]
  %v14 = vld [vmem:[%s1 + $0x8] sm:$0xff]
  %v15 = vsub.f32 %v11, %v13
  %v16 = vsub.f32 %v12, %v14
  %v17 = vand.u32 2147483647, %v15
  %v18 = vand.u32 2147483647, %v16
  %19 = vst [vmem:[%s2] sm:$0xff] %v17
  %20 = vst [vmem:[%s2 + $0x8] sm:$0xff] %v18
  // Predicated region
  $region10: #{rmse_loss.1} parent=0 // pred_check
    _
  $region11: #{rmse_loss.1} parent=0 // pred_check_branch
    %22 = sbr.rel (0) target = $region13
  $region12: #{rmse_loss.1} parent=0 // pred_region
    _
  $region13: #{rmse_loss.1} parent=0 // pred_fallthru
    _
  // Predicated region
  $region14: #{rmse_loss.1} parent=0 // pred_check
    _
  $region15: #{rmse_loss.1} parent=0 // pred_check_branch
    %24 = sbr.rel (0) target = $region17
  $region16: #{rmse_loss.1} parent=0 // pred_region
    _
  $region17: #{rmse_loss.1} parent=0 // pred_fallthru
    _

</llo_original>
